<compile_context>
chip_gen: v5e
topology: v5e:2x2
jax: 0.10.0
libtpu: 0.0.40
codegen_flags: <defaults>
</compile_context>

<pallas_src>
import math

import jax
import jax.numpy as jnp
from jax.experimental import pallas as pl
from jax.experimental.pallas import tpu as pltpu


# ----------------------------------------------------------------------------
# Kernels — plain VPU adds; pe broadcasts over sublanes (case A) or batch (case B)
# ----------------------------------------------------------------------------
def _pe_add_kernel(x_ref, pe_ref, o_ref):
    # x_ref: (l_blk, r_blk, c_blk), pe_ref: (1, 1|r_blk, c_blk) — same dtype.
    o_ref[...] = x_ref[...] + pe_ref[...]


def _pe_add_stillness_kernel(x_ref, pe_ref, s_ref, o_ref):
    o_ref[...] = x_ref[...] + pe_ref[...] + s_ref[...]


# ----------------------------------------------------------------------------
# Tiling heuristics
# ----------------------------------------------------------------------------
_LANE = 128
_MAX_BLOCK_BYTES = 4 << 20        # diminishing returns beyond ~4 MiB per block
_MIN_STEP_BYTES = 512 << 10       # never shrink a block below ~512 KiB to get steps
_MAX_GRID_STEPS_TARGET = 8        # enough for pipelining + both v7x TensorCores


def _vmem_scope_bytes():
    """Scoped-VMEM budget we are willing to use (explicit vmem_limit_bytes)."""
    phys = 64 << 20  # conservative: v7x per-TensorCore physical VMEM
    try:
        get_info = getattr(pltpu, "get_tpu_info", None)
        if get_info is not None:
            info = get_info()
            phys = int(getattr(info, "vmem_capacity_bytes", phys)) or phys
    except Exception:
        pass
    return max(16 << 20, min(phys // 2, 32 << 20))


def _smallest_divisor_geq(n, lo):
    """Smallest divisor of n that is >= lo (falls back to n)."""
    if lo <= 1:
        return 1
    best = n
    i = 1
    while i * i <= n:
        if n % i == 0:
            for d in (i, n // i):
                if lo <= d < best:
                    best = d
        i += 1
    return best


def _pick_tile(extent, cap, gran):
    """Largest tile <= cap in multiples of `gran`, preferring exact divisors of
    `extent` (no masked edge blocks). Full extent if it fits or is below gran."""
    if extent <= gran or extent <= cap:
        return extent
    best = max(gran, (cap // gran) * gran)
    probe = best
    while probe >= gran:
        if extent % probe == 0:
            return probe
        probe -= gran
    return best  # non-dividing multiple of gran: legal, Pallas masks the edge


def _choose_tiles(lead, rows, cols, itemsize, n_streams, scope):
    """Pick (lead_blk, row_blk, col_blk) for a (lead, rows, cols) layout."""
    sub = max(8, 32 // itemsize)                       # dtype-aware sublane granularity
    per_stream = max(128 << 10, (scope * 3 // 4) // (n_streams * 2))
    target = min(per_stream, _MAX_BLOCK_BYTES)

    total = lead * rows * cols * itemsize
    if total >= 2 * _MIN_STEP_BYTES:
        # Enough grid steps for pipelining / both v7x cores, but each step
        # still moves >= ~512 KiB.
        min_tiles = min(_MAX_GRID_STEPS_TARGET, total // _MIN_STEP_BYTES)
        target = min(target, max(_MIN_STEP_BYTES, -(-total // min_tiles)))

    # Split rows (sublane axis) first: keeps each block's HBM reads contiguous
    # and (layout A) lets the pe tile stay resident across row steps.
    r_blk = _pick_tile(rows, max(1, target // (lead * cols * itemsize)), sub)
    # Then columns (lane axis) in multiples of 128 (lane-dense, unmasked vst).
    c_blk = _pick_tile(cols, max(1, target // (lead * r_blk * itemsize)), _LANE)
    # Finally the leading (batch) dim, rarely needed.
    l_blk = _pick_tile(lead, max(1, target // (r_blk * c_blk * itemsize)), 1)
    return l_blk, r_blk, c_blk


# ----------------------------------------------------------------------------
# Module-equivalent wrapper
# ----------------------------------------------------------------------------
class PositionalEncoding:
    def __init__(self, d_model, max_len=5000, use_stillness=False):
        self.use_stillness = use_stillness
        self.d_model = d_model
        self.max_len = max_len
        # Sinusoidal table, built once (analogous to register_buffer).
        position = jnp.arange(0, max_len, dtype=jnp.float32)[:, None]      # (max_len, 1)
        div_term = jnp.exp(
            jnp.arange(0, d_model, 2, dtype=jnp.float32)
            * (-math.log(10000.0) / d_model)
        )                                                                   # (ceil(d/2),)
        pe = jnp.zeros((max_len, d_model), dtype=jnp.float32)
        pe = pe.at[:, 0::2].set(jnp.sin(position * div_term))
        # cos half has floor(d/2) columns — slice div_term so odd d_model works.
        pe = pe.at[:, 1::2].set(jnp.cos(position * div_term[: d_model // 2]))
        self.pe = pe                                                        # (max_len, d_model)

        self._vmem_scope = _vmem_scope_bytes()          # queried once, outside jit
        self._forward_jit = jax.jit(self._forward)       # fuse wrapper ops per shape

    # -------------------------------------------------------------- public API
    def __call__(self, x, stillness=None):
        if x.ndim != 3:
            raise ValueError(f"expected x of shape (B, S, D), got {x.shape}")
        if x.shape[1] > self.max_len:
            raise ValueError(
                f"sequence length {x.shape[1]} exceeds max_len={self.max_len}")
        if not (self.use_stillness and stillness is not None):
            stillness = None
        return self._forward_jit(x, stillness)

    # ----------------------------------------------------------------- forward
    def _forward(self, x, stillness):
        B, S, D = x.shape
        dtype = x.dtype
        itemsize = jnp.dtype(dtype).itemsize
        sub = max(8, 32 // itemsize)

        # pe slice, cast to activation dtype once (see precision note at top).
        pe_slice = self.pe[:S, :].astype(dtype)                      # (S, D)

        s_full = None
        if stillness is not None:
            st = jnp.asarray(stillness, dtype=dtype)
            if st.ndim > 3:
                raise ValueError("stillness with more than 3 dims is not supported")
            if st.ndim < 3 or st.shape[0] == 1:
                # Batch-invariant stillness: fold into the tiny pe operand.
                # Broadcasting matches the reference `x + stillness`.
                pe_slice = pe_slice + st             # (S,D) or (1,S,D), S*D elems
            else:
                # Genuinely per-batch stillness: stream it through the kernel.
                s_full = jnp.broadcast_to(st, (B, S, D))

        # ---------------- layout ----------------
        if B >= sub:
            # Layout A: batch on sublanes, lane-dense columns S*D.
            lead, rows, cols = 1, B, S * D
            pe3 = pe_slice.reshape(1, 1, cols)       # broadcasts over sublanes
            pe_rows = 1
        else:
            # Layout B (small batch): fold S1 sequence steps onto the sublane
            # axis so blocks keep >= `sub` occupied sublanes.
            S1 = _smallest_divisor_geq(S, sub)
            lead, rows, cols = B, S1, (S // S1) * D
            pe3 = pe_slice.reshape(1, S1, cols)      # broadcasts over batch (lead)
            pe_rows = S1
        x3 = x.reshape(lead, rows, cols)
        s3 = s_full.reshape(lead, rows, cols) if s_full is not None else None

        n_streams = 3 + (1 if s3 is not None else 0)     # x, out, pe (+ stillness)
        l_blk, r_blk, c_blk = _choose_tiles(
            lead, rows, cols, itemsize, n_streams, self._vmem_scope)

        # Grid: columns outer, rows middle, batch innermost — pe's block index
        # is constant across the inner axes it does not depend on, so Pallas
        # skips its re-DMA there (total pe traffic == pe size).
        grid = (pl.cdiv(cols, c_blk), pl.cdiv(rows, r_blk), pl.cdiv(lead, l_blk))

        data_spec = pl.BlockSpec((l_blk, r_blk, c_blk),
                                 lambda ci, ri, li: (li, ri, ci))
        if pe_rows == 1:
            pe_spec = pl.BlockSpec((1, 1, c_blk), lambda ci, ri, li: (0, 0, ci))
        else:
            pe_spec = pl.BlockSpec((1, r_blk, c_blk), lambda ci, ri, li: (0, ri, ci))

        common = dict(
            out_shape=jax.ShapeDtypeStruct((lead, rows, cols), dtype),
            grid=grid,
            out_specs=pl.BlockSpec((l_blk, r_blk, c_blk),
                                   lambda ci, ri, li: (li, ri, ci)),
            compiler_params=pltpu.CompilerParams(
                dimension_semantics=("parallel", "parallel", "parallel"),
                vmem_limit_bytes=self._vmem_scope,
            ),
        )

        if s3 is not None:
            out3 = pl.pallas_call(
                _pe_add_stillness_kernel,
                in_specs=[data_spec, pe_spec, data_spec],
                **common,
            )(x3, pe3, s3)
        else:
            out3 = pl.pallas_call(
                _pe_add_kernel,
                in_specs=[data_spec, pe_spec],
                **common,
            )(x3, pe3)

        return out3.reshape(B, S, D)


# ----------------------------------------------------------------------------
# Demo / self-check
# ----------------------------------------------------------------------------
if __name__ == "__main__":
    key = jax.random.PRNGKey(0)
    kx, ks, ky = jax.random.split(key, 3)

    # Small shapes consistent with the module: batch=2, seq=8, d_model=32.
    B, S, D = 2, 8, 32
    x = jax.random.normal(kx, (B, S, D), dtype=jnp.float32)
    still_batch = jax.random.normal(ks, (B, S, D), dtype=jnp.float32)  # per-batch
    still_seq = still_batch[0]                                         # (S, D), batch-invariant

    # 1) plain positional-encoding add
    mod = PositionalEncoding(d_model=D, max_len=64, use_stillness=False)
    out = jax.block_until_ready(mod(x))
    ref = x + mod.pe[None, :S, :]
    assert jnp.allclose(out, ref, atol=1e-6), "mismatch (no stillness)"

    # 2) per-batch stillness (streamed through the kernel)
    mod_s = PositionalEncoding(d_model=D, max_len=64, use_stillness=True)
    out_b = jax.block_until_ready(mod_s(x, still_batch))
    ref_b = x + mod_s.pe[None, :S, :] + still_batch
    assert jnp.allclose(out_b, ref_b, atol=1e-6), "mismatch (per-batch stillness)"

    # 3) batch-invariant stillness (folded into pe in the wrapper)
    out_s = jax.block_until_ready(mod_s(x, still_seq))
    ref_s = x + mod_s.pe[None, :S, :] + still_seq[None, :, :]
    assert jnp.allclose(out_s, ref_s, atol=1e-6), "mismatch (folded stillness)"

    # 4) larger case that exercises the multi-step tiled grid (layout A, B >= 8)
    B2, S2, D2 = 8, 256, 160
    x2 = jax.random.normal(ky, (B2, S2, D2), dtype=jnp.float32)
    mod2 = PositionalEncoding(d_model=D2, max_len=512, use_stillness=False)
    out2 = jax.block_until_ready(mod2(x2))
    ref2 = x2 + mod2.pe[None, :S2, :]
    assert jnp.allclose(out2, ref2, atol=1e-6), "mismatch (tiled case)"

    print("KERNEL_OK")
</pallas_src>

<mosaic_0001>
module attributes {stable_mosaic.version = 11 : i64} {
  func.func @_pe_add_kernel(%arg0: i32, %arg1: i32, %arg2: i32, %arg3: memref<2x8x32xf32, #tpu.memory_space<vmem>>, %arg4: memref<1x8x32xf32, #tpu.memory_space<vmem>>, %arg5: memref<2x8x32xf32, #tpu.memory_space<vmem>>) attributes {dimension_semantics = [#tpu.dimension_semantics<parallel>, #tpu.dimension_semantics<parallel>, #tpu.dimension_semantics<parallel>], iteration_bounds = array<i64: 1, 1, 1>, scalar_prefetch = 0 : i64, scratch_operands = 0 : i64, tpu.core_type = #tpu.core_type<tc>, window_params = [{transform_indices = @transform_0, window_bounds = array<i64: 2, 8, 32>}, {transform_indices = @transform_1, window_bounds = array<i64: 1, 8, 32>}, {transform_indices = @transform_2, window_bounds = array<i64: 2, 8, 32>}]} {
    %c0 = arith.constant 0 : index
    %c0_0 = arith.constant 0 : index
    %c0_1 = arith.constant 0 : index
    %0 = vector.load %arg3[%c0, %c0_0, %c0_1] : memref<2x8x32xf32, #tpu.memory_space<vmem>>, vector<2x8x32xf32>
    %c0_2 = arith.constant 0 : index
    %c0_3 = arith.constant 0 : index
    %c0_4 = arith.constant 0 : index
    %1 = vector.load %arg4[%c0_2, %c0_3, %c0_4] : memref<1x8x32xf32, #tpu.memory_space<vmem>>, vector<1x8x32xf32>
    %2 = vector.broadcast %1 : vector<1x8x32xf32> to vector<2x8x32xf32>
    %3 = arith.addf %0, %2 : vector<2x8x32xf32>
    %c0_5 = arith.constant 0 : index
    %c0_6 = arith.constant 0 : index
    %c0_7 = arith.constant 0 : index
    %4 = vector.load %arg5[%c0_5, %c0_6, %c0_7] : memref<2x8x32xf32, #tpu.memory_space<vmem>>, vector<2x8x32xf32>
    tpu.vector_store %arg5[%c0_5, %c0_6, %c0_7], %3 {strides = array<i32>} : memref<2x8x32xf32, #tpu.memory_space<vmem>>, vector<2x8x32xf32>,
    return
  }
  func.func @transform_0(%arg0: i32, %arg1: i32, %arg2: i32) -> (i32, i32, i32) {
    %c0_i32 = arith.constant 0 : i32
    return %arg2, %arg1, %arg0 : i32, i32, i32
  }
  func.func @transform_1(%arg0: i32, %arg1: i32, %arg2: i32) -> (i32, i32, i32) {
    %c0_i32 = arith.constant 0 : i32
    %c0_i32_0 = arith.constant 0 : i32
    return %c0_i32, %arg1, %arg0 : i32, i32, i32
  }
  func.func @transform_2(%arg0: i32, %arg1: i32, %arg2: i32) -> (i32, i32, i32) {
    %c0_i32 = arith.constant 0 : i32
    return %arg2, %arg1, %arg0 : i32, i32, i32
  }
}

</mosaic_0001>

<llo_original>
// kernel: _forward.1
$region0: #{_forward.1}
  #allocation0 [shape = 'u32[]', space=smem, size = 0x4, offset = 0x4, fixed_abs, tag = 'smem constant byte address 0x4 - core index']
  #allocation1 [shape = 'u32[72,128]{1,0:T(1,128)}', space=vmem, size = 0x9000, scoped, tag = 'internal scratch']
  %s0 = inlined_call_operand.hbm [shape: f32[2,8,32], index: 0, kind: input, shape index: {}]
  %s1 = inlined_call_operand.hbm [shape: f32[1,8,32], index: 1, kind: input, shape index: {}]
  %s2 = inlined_call_operand.hbm [shape: f32[2,8,32], index: 2, kind: output, shape index: {}]
  %s3 = sld [smem:[#allocation0]]
  $region26: #{_forward.1} parent=0
    _
  %s5 = ssub.s32 1, %s3
  %s6 = scalar_select 0, %s5, %s3
  $region1: #{_forward.1} parent=0
    #allocation2 [shape = 'u8[8192]{0}', space=vmem, size = 0x2000, scoped, tag = 'input window, operand 0, single buffered']
    #allocation3 [shape = 's32[1]{0}', space=sflag, size = 0x4, scoped, tag = 'scoped memory for _forward.1']
    #allocation4 [shape = 's32[1]{0}', space=sflag, size = 0x4, scoped, tag = 'scoped memory for _forward.1']
    #allocation5 [shape = 'u8[4096]{0}', space=vmem, size = 0x1000, scoped, tag = 'input window, operand 1, single buffered']
    #allocation6 [shape = 's32[1]{0}', space=sflag, size = 0x4, scoped, tag = 'scoped memory for _forward.1']
    #allocation7 [shape = 'u8[8192]{0}', space=vmem, size = 0x2000, scoped, tag = 'output window, operand 0, single buffered']
    %7 = vsyncpa [#allocation3], 0
    %8 = vsyncpa [#allocation6], 0
    %9 = vsyncpa [#allocation4], 0
    // Predicated region
    $region2: #{_forward.1} parent=1 // pred_check
      _
    $region3: #{_forward.1} parent=1 // pred_check_branch
      %11 = sbr.rel (0) target = $region5
    $region4: #{_forward.1} parent=1 // pred_region
      %13 = vsyncadd [#allocation3], 0
      %s14 = sshll.u32 %s0, 4
      %s15 = int_to_ptr.hbm [resolvable:$true] %s14
      %s16 = sshll.u32 [#allocation2], 4
      %s17 = int_to_ptr.vmem [resolvable:$true] %s16
      %22 = dma.hbm_to_vmem [thread:$0]  %s15, 256, %s17, [#allocation3], 128, 128, 8
    $region5: #{_forward.1} parent=1 // pred_fallthru
      _
    // Predicated region
    $region6: #{_forward.1} parent=1 // pred_check
      _
    $region7: #{_forward.1} parent=1 // pred_check_branch
      %24 = sbr.rel (0) target = $region9
    $region8: #{_forward.1} parent=1 // pred_region
      %26 = vsyncadd [#allocation6], 0
      %s28 = sshll.u32 %s1, 4
      %s29 = int_to_ptr.hbm [resolvable:$true] %s28
      %s30 = sshll.u32 [#allocation5], 4
      %s31 = int_to_ptr.vmem [resolvable:$true] %s30
      %33 = dma.hbm_to_vmem [thread:$0]  %s29, 128, %s31, [#allocation6]
    $region9: #{_forward.1} parent=1 // pred_fallthru
      _
    // Predicated region
    $region10: #{_forward.1} parent=1 // pred_check
      _
    $region11: #{_forward.1} parent=1 // pred_check_branch
      %35 = sbr.rel (0) target = $region13
    $region12: #{_forward.1} parent=1 // pred_region
      %37 = dma.done [#allocation3], 256
    $region13: #{_forward.1} parent=1 // pred_fallthru
      _
    // Predicated region
    $region14: #{_forward.1} parent=1 // pred_check
      _
    $region15: #{_forward.1} parent=1 // pred_check_branch
      %39 = sbr.rel (0) target = $region17
    $region16: #{_forward.1} parent=1 // pred_region
      %41 = dma.done [#allocation6], 128
    $region17: #{_forward.1} parent=1 // pred_fallthru
      _
    %v42 = vld [vmem:[#allocation2] sm:$0xff]
    %v43 = vld [vmem:[#allocation2 + $0x8] sm:$0xff]
    %v44 = vld [vmem:[#allocation5] sm:$0xff]
    %v45 = vadd.f32 %v42, %v44
    %v46 = vadd.f32 %v43, %v44
    %vm47 = vcmask 261120
    %48 = vst.msk [vmem:[#allocation7] sm:$0xff] %vm47, %v45
    %49 = vst.msk [vmem:[#allocation7 + $0x8] sm:$0xff] %vm47, %v46
    // Predicated region
    $region18: #{_forward.1} parent=1 // pred_check
      _
    $region19: #{_forward.1} parent=1 // pred_check_branch
      %51 = sbr.rel (0) target = $region21
    $region20: #{_forward.1} parent=1 // pred_region
      %53 = vsyncadd [#allocation4], 0
      %s54 = sshll.u32 [#allocation7], 4
      %s55 = int_to_ptr.vmem [resolvable:$true] %s54
      %s56 = sshll.u32 %s2, 4
      %s57 = int_to_ptr.hbm [resolvable:$true] %s56
      %62 = dma.vmem_to_hbm [thread:$0]  %s55, 256, %s57, [#allocation4], 128, 128, 8
    $region21: #{_forward.1} parent=1 // pred_fallthru
      _
    // Predicated region
    $region22: #{_forward.1} parent=1 // pred_check
      _
    $region23: #{_forward.1} parent=1 // pred_check_branch
      %64 = sbr.rel (0) target = $region25
    $region24: #{_forward.1} parent=1 // pred_region
      %66 = dma.done [#allocation4], 256
    $region25: #{_forward.1} parent=1 // pred_fallthru
      _
    %67 = vsyncpa [#allocation3], 1
    %68 = vsyncpa [#allocation6], 1
    %69 = vsyncpa [#allocation4], 1

</llo_original>
